<compile_context>
chip_gen: v7x
topology: tpu7x:2x2x1
jax: 0.10.0
libtpu: 0.0.40
codegen_flags: <defaults>
</compile_context>

<pallas_src>
import functools

import jax
import jax.numpy as jnp
from jax.experimental import pallas as pl
from jax.experimental.pallas import tpu as pltpu

STATE_SPACE = 2     # env.observation_space.shape[0] for MountainCar-v0
ACTION_SPACE = 3    # env.action_space.n            for MountainCar-v0
HIDDEN = 200


def _round_up(x, m):
    return ((x + m - 1) // m) * m


def policy_kernel(x_ref, w1t_ref, w2t_ref, o_ref):
    # Both matmuls run on the MXU with f32 accumulation.
    h = jnp.dot(x_ref[...], w1t_ref[...], preferred_element_type=jnp.float32)
    o_ref[...] = jnp.dot(h, w2t_ref[...],
                         preferred_element_type=jnp.float32).astype(o_ref.dtype)


def make_policy_params(w1, w2, dtype=jnp.float32):
    """Pad + transpose the torch-layout weights ONCE (init time, not per step).

    w1: (H, S) = l1.weight ; w2: (A, H) = l2.weight.
    Returns (w1t_p, w2t_p) with shapes (Sp, Hp) and (Hp, Ap) where
      Sp = round_up(S, 8)    (contraction dim only needs the sublane constraint)
      Hp = round_up(H, 128)  (lane dim of w1t; 200 -> 256, one full MXU pass on v6e/v7x)
      Ap = round_up(A, 128)  (lane dim of the output)
    dtype=jnp.bfloat16 halves weight DMA bytes if desired (MXU accumulates f32 anyway).
    """
    H, S = w1.shape
    A, _ = w2.shape
    Sp = _round_up(S, 8)
    Hp = _round_up(H, 128)
    Ap = _round_up(A, 128)
    w1t_p = jnp.zeros((Sp, Hp), dtype).at[:S, :H].set(w1.T.astype(dtype))
    w2t_p = jnp.zeros((Hp, Ap), dtype).at[:H, :A].set(w2.T.astype(dtype))
    return w1t_p, w2t_p


@functools.partial(jax.jit, static_argnums=(3,), static_argnames=("batch_block",))
def policy_forward(x, w1t_p, w2t_p, action_space, *, batch_block=256):
    """x: (B, S) f32; w1t_p/w2t_p from make_policy_params. Returns (B, action_space)."""
    B, S = x.shape
    Sp, Hp = w1t_p.shape
    _, Ap = w2t_p.shape

    if B <= batch_block:
        # --- small (single-env / few-env) batch: everything resident in VMEM,
        #     no grid, no pipeline bookkeeping.
        Bp = _round_up(B, 8)
        if (B, S) == (Bp, Sp):
            x_p = x
        else:
            x_p = jnp.zeros((Bp, Sp), jnp.float32).at[:B, :S].set(x)

        out_p = pl.pallas_call(
            policy_kernel,
            out_shape=jax.ShapeDtypeStruct((Bp, Ap), jnp.float32),
            in_specs=[
                pl.BlockSpec(memory_space=pltpu.MemorySpace.VMEM),
                pl.BlockSpec(memory_space=pltpu.MemorySpace.VMEM),
                pl.BlockSpec(memory_space=pltpu.MemorySpace.VMEM),
            ],
            out_specs=pl.BlockSpec(memory_space=pltpu.MemorySpace.VMEM),
            cost_estimate=pl.CostEstimate(
                flops=2 * Bp * Sp * Hp + 2 * Bp * Hp * Ap,
                transcendentals=0,
                bytes_accessed=4 * (Bp * Sp + Sp * Hp + Hp * Ap + Bp * Ap),
            ),
        )(x_p, w1t_p, w2t_p)
    else:
        # --- large vectorized-env batch: shard rows across the grid so v7x's
        #     two TensorCores both work; weights (< 160 KiB) stay resident.
        Bp = _round_up(B, batch_block)
        x_p = jnp.zeros((Bp, Sp), jnp.float32).at[:B, :S].set(x)

        out_p = pl.pallas_call(
            policy_kernel,
            out_shape=jax.ShapeDtypeStruct((Bp, Ap), jnp.float32),
            grid=(Bp // batch_block,),
            in_specs=[
                pl.BlockSpec((batch_block, Sp), lambda i: (i, 0)),
                pl.BlockSpec((Sp, Hp), lambda i: (0, 0)),
                pl.BlockSpec((Hp, Ap), lambda i: (0, 0)),
            ],
            out_specs=pl.BlockSpec((batch_block, Ap), lambda i: (i, 0)),
            compiler_params=pltpu.CompilerParams(
                dimension_semantics=("parallel",)),
        )(x_p, w1t_p, w2t_p)

    return out_p[:B, :action_space]


if __name__ == "__main__":
    key = jax.random.PRNGKey(0)
    k_x, k_xb, k_w1, k_w2 = jax.random.split(key, 4)

    # Deterministic synthetic weights (PyTorch-style uniform(-1/sqrt(fan_in), 1/sqrt(fan_in)))
    bound1 = 1.0 / jnp.sqrt(jnp.float32(STATE_SPACE))
    bound2 = 1.0 / jnp.sqrt(jnp.float32(HIDDEN))
    w1 = jax.random.uniform(k_w1, (HIDDEN, STATE_SPACE), jnp.float32,
                            minval=-bound1, maxval=bound1)   # l1.weight
    w2 = jax.random.uniform(k_w2, (ACTION_SPACE, HIDDEN), jnp.float32,
                            minval=-bound2, maxval=bound2)   # l2.weight

    # Pad / transpose weights once, outside the per-step forward.
    w1t_p, w2t_p = make_policy_params(w1, w2)

    # 1) Small batch of MountainCar states (no-grid, fully-VMEM-resident path).
    B = 8
    x = jax.random.normal(k_x, (B, STATE_SPACE), dtype=jnp.float32)
    out = jax.block_until_ready(policy_forward(x, w1t_p, w2t_p, ACTION_SPACE))
    ref = (x @ w1.T) @ w2.T
    assert out.shape == (B, ACTION_SPACE)
    assert jnp.allclose(out, ref, atol=1e-4, rtol=1e-4)

    # 2) Larger vectorized-env batch exercising the batch-parallel grid path
    #    (uses both TensorCores on v7x via dimension_semantics=("parallel",)).
    Bb = 272
    xb = jax.random.normal(k_xb, (Bb, STATE_SPACE), dtype=jnp.float32)
    outb = jax.block_until_ready(policy_forward(xb, w1t_p, w2t_p, ACTION_SPACE))
    refb = (xb @ w1.T) @ w2.T
    assert outb.shape == (Bb, ACTION_SPACE)
    assert jnp.allclose(outb, refb, atol=1e-4, rtol=1e-4)

    print("KERNEL_OK")
</pallas_src>

<mosaic_0001>
module attributes {stable_mosaic.version = 11 : i64} {
  func.func @policy_kernel(%arg0: memref<8x8xf32, #tpu.memory_space<vmem>>, %arg1: memref<8x256xf32, #tpu.memory_space<vmem>>, %arg2: memref<256x128xf32, #tpu.memory_space<vmem>>, %arg3: memref<8x128xf32, #tpu.memory_space<vmem>>) attributes {dimension_semantics = [], scalar_prefetch = 0 : i64, scratch_operands = 0 : i64, tpu.core_type = #tpu.core_type<tc>} {
    %c0 = arith.constant 0 : index
    %c0_0 = arith.constant 0 : index
    %0 = vector.load %arg0[%c0, %c0_0] : memref<8x8xf32, #tpu.memory_space<vmem>>, vector<8x8xf32>
    %c0_1 = arith.constant 0 : index
    %c0_2 = arith.constant 0 : index
    %1 = vector.load %arg1[%c0_1, %c0_2] : memref<8x256xf32, #tpu.memory_space<vmem>>, vector<8x256xf32>
    %cst = arith.constant dense<0.000000e+00> : vector<8x256xf32>
    %2 = tpu.matmul %0, %1, %cst {dimension_numbers = #tpu.dot_dimension_numbers<[1], [0], [0], [1], [0, 0, 1, 1], [], []>} : vector<8x8xf32>, vector<8x256xf32>, vector<8x256xf32> -> vector<8x256xf32>
    %c0_3 = arith.constant 0 : index
    %c0_4 = arith.constant 0 : index
    %3 = vector.load %arg2[%c0_3, %c0_4] : memref<256x128xf32, #tpu.memory_space<vmem>>, vector<256x128xf32>
    %cst_5 = arith.constant dense<0.000000e+00> : vector<8x128xf32>
    %4 = tpu.matmul %2, %3, %cst_5 {dimension_numbers = #tpu.dot_dimension_numbers<[1], [0], [0], [1], [0, 0, 1, 1], [], []>} : vector<8x256xf32>, vector<256x128xf32>, vector<8x128xf32> -> vector<8x128xf32>
    %c0_6 = arith.constant 0 : index
    %c0_7 = arith.constant 0 : index
    %5 = vector.load %arg3[%c0_6, %c0_7] : memref<8x128xf32, #tpu.memory_space<vmem>>, vector<8x128xf32>
    tpu.vector_store %arg3[%c0_6, %c0_7], %4 {strides = array<i32>} : memref<8x128xf32, #tpu.memory_space<vmem>>, vector<8x128xf32>,
    return
  }
}

</mosaic_0001>

<llo_original>
// kernel: policy_forward.1
$region0: #{policy_forward.1}
  #allocation0 [shape = 'u32[]', space=smem, size = 0x4, offset = 0x4, fixed_abs, tag = 'smem constant byte address 0x4 - core index']
  #allocation1 [shape = 'u32[144,128]{1,0:T(1,128)}', space=vmem, size = 0x12000, scoped, tag = 'internal scratch']
  %s0 = inlined_call_operand.vmem [shape: f32[8,8], index: 0, kind: input, shape index: {}]
  %s1 = inlined_call_operand.vmem [shape: f32[8,256], index: 1, kind: input, shape index: {}]
  %s2 = inlined_call_operand.hbm [shape: f32[256,128], index: 2, kind: input, shape index: {}]
  %s3 = inlined_call_operand.vmem [shape: f32[8,128], index: 3, kind: output, shape index: {}]
  %s4 = sld [smem:[#allocation0]]
  $region26: #{policy_forward.1} parent=0
    _
  %s6 = ssub.s32 1, %s4
  %s7 = scalar_select 0, %s6, %s4
  $region1: #{policy_forward.1} parent=0
    #allocation2 [shape = 'u8[131072]{0}', space=vmem, size = 0x20000, scoped, tag = 'input window, operand 2, single buffered']
    #allocation3 [shape = 's32[1]{0}', space=sflag, size = 0x4, scoped, tag = 'scoped memory for policy_forward.1']
    %8 = vsyncpa [#allocation3], 0
    // Predicated region
    $region2: #{policy_forward.1} parent=1 // pred_check
      _
    $region3: #{policy_forward.1} parent=1 // pred_check_branch
      %10 = sbr.rel (0) target = $region5
    $region4: #{policy_forward.1} parent=1 // pred_region
      _
    $region5: #{policy_forward.1} parent=1 // pred_fallthru
      _
    // Predicated region
    $region6: #{policy_forward.1} parent=1 // pred_check
      _
    $region7: #{policy_forward.1} parent=1 // pred_check_branch
      %12 = sbr.rel (0) target = $region9
    $region8: #{policy_forward.1} parent=1 // pred_region
      _
    $region9: #{policy_forward.1} parent=1 // pred_fallthru
      _
    // Predicated region
    $region10: #{policy_forward.1} parent=1 // pred_check
      _
    $region11: #{policy_forward.1} parent=1 // pred_check_branch
      %14 = sbr.rel (0) target = $region13
    $region12: #{policy_forward.1} parent=1 // pred_region
      %s16 = ssub.s32 4096, 4096
      %17 = vsyncadd [#allocation3], %s16
      %s18 = sshll.u32 [#allocation2], 4
      %s19 = int_to_ptr.vmem [resolvable:$true] %s18
      %24 = dma.hbm_to_vmem [thread:$0]  %s2, 4096, %s19, [#allocation3], 128, 128, 8
    $region13: #{policy_forward.1} parent=1 // pred_fallthru
      _
    // Predicated region
    $region14: #{policy_forward.1} parent=1 // pred_check
      _
    $region15: #{policy_forward.1} parent=1 // pred_check_branch
      %26 = sbr.rel (0) target = $region17
    $region16: #{policy_forward.1} parent=1 // pred_region
      %27 = dma.done [#allocation3], 4096
    $region17: #{policy_forward.1} parent=1 // pred_fallthru
      _
    %v28 = vld [vmem:[%s0] sm:$0xff]
    %v29 = vld [vmem:[%s1] sm:$0xff]
    %v30 = vld [vmem:[%s1 + $0x8] sm:$0xff]
    %vm31 = vcmask 64512
    %v33 = vsel %vm31, %v28, 0
    %35 = vmatprep.subr.mxu0 %v30
    %36 = vmatpush1.msra.mxu0 %v29
    %37 = vmatprep.subr.mxu0 0.0
    %38 = vmatpush1.msra.mxu0 0.0
    %39 = vmatprep.subr.mxu0 0.0
    %40 = vmatpush1.msra.mxu0 0.0
    %41 = vmatprep.subr.mxu0 0.0
    %42 = vmatpush1.msra.mxu0 0.0
    %43 = vmatprep.subr.mxu0 0.0
    %44 = vmatpush1.msra.mxu0 0.0
    %45 = vmatprep.subr.mxu0 0.0
    %46 = vmatpush1.msra.mxu0 0.0
    %47 = vmatprep.subr.mxu0 0.0
    %48 = vmatpush1.msra.mxu0 0.0
    %49 = vmatprep.subr.mxu0 0.0
    %50 = vmatpush1.msra.mxu0 0.0
    %51 = vmatprep.subr.mxu0 0.0
    %52 = vmatpush1.msra.mxu0 0.0
    %53 = vmatprep.subr.mxu0 0.0
    %54 = vmatpush1.msra.mxu0 0.0
    %55 = vmatprep.subr.mxu0 0.0
    %56 = vmatpush1.msra.mxu0 0.0
    %57 = vmatprep.subr.mxu0 0.0
    %58 = vmatpush1.msra.mxu0 0.0
    %59 = vmatprep.subr.mxu0 0.0
    %60 = vmatpush1.msra.mxu0 0.0
    %61 = vmatprep.subr.mxu0 0.0
    %62 = vmatpush1.msra.mxu0 0.0
    %63 = vmatprep.subr.mxu0 0.0
    %64 = vmatpush1.msra.mxu0 0.0
    %65 = vmatprep.subr.mxu0 0.0
    %66 = vmatpush1.msra.mxu0 0.0
    %67 = vmatprep.subr.mxu0 0.0
    %68 = vmatpush1.msra.mxu0 0.0
    %69 = vmatprep.subr.mxu0 0.0
    %70 = vmatpush1.msra.mxu0 0.0
    %71 = vmatprep.subr.mxu0 0.0
    %72 = vmatpush1.msra.mxu0 0.0
    %73 = vmatprep.subr.mxu0 0.0
    %74 = vmatpush1.msra.mxu0 0.0
    %75 = vmatprep.subr.mxu0 0.0
    %76 = vmatpush1.msra.mxu0 0.0
    %77 = vmatprep.subr.mxu0 0.0
    %78 = vmatpush1.msra.mxu0 0.0
    %79 = vmatprep.subr.mxu0 0.0
    %80 = vmatpush1.msra.mxu0 0.0
    %81 = vmatprep.subr.mxu0 0.0
    %82 = vmatpush1.msra.mxu0 0.0
    %83 = vmatprep.subr.mxu0 0.0
    %84 = vmatpush1.msra.mxu0 0.0
    %85 = vmatprep.subr.mxu0 0.0
    %86 = vmatpush1.msra.mxu0 0.0
    %87 = vmatprep.subr.mxu0 0.0
    %88 = vmatpush1.msra.mxu0 0.0
    %89 = vmatprep.subr.mxu0 0.0
    %90 = vmatpush1.msra.mxu0 0.0
    %91 = vmatprep.subr.mxu0 0.0
    %92 = vmatpush1.msra.mxu0 0.0
    %93 = vmatprep.subr.mxu0 0.0
    %94 = vmatpush1.msra.mxu0 0.0
    %95 = vmatprep.subr.mxu0 0.0
    %96 = vmatpush1.msra.mxu0 0.0
    %97 = vmatprep.subr.mxu0 0.0
    %98 = vmatpush1.msra.mxu0 0.0
    %99 = vmatprep.mubr.f32.mxu0 0.0
    %100 = vmatmul.mubr.f32.gmra.mrb[0].mxu0 %v33
    %v101 = vpop.f32.mrb[0].mxu0
    %v102 = vadd.f32 0.0, %v101
    %v103 = vpop.f32.mrb[0].mxu0
    %v104 = vadd.f32 0.0, %v103
    %105 = vdwg.mxu0
    %v106 = vld [vmem:[#allocation2] sm:$0xff]
    %v107 = vld [vmem:[#allocation2 + $0x8] sm:$0xff]
    %v108 = vld [vmem:[#allocation2 + $0x10] sm:$0xff]
    %v109 = vld [vmem:[#allocation2 + $0x18] sm:$0xff]
    %v110 = vld [vmem:[#allocation2 + $0x20] sm:$0xff]
    %v111 = vld [vmem:[#allocation2 + $0x28] sm:$0xff]
    %v112 = vld [vmem:[#allocation2 + $0x30] sm:$0xff]
    %v113 = vld [vmem:[#allocation2 + $0x38] sm:$0xff]
    %v114 = vld [vmem:[#allocation2 + $0x40] sm:$0xff]
    %v115 = vld [vmem:[#allocation2 + $0x48] sm:$0xff]
    %v116 = vld [vmem:[#allocation2 + $0x50] sm:$0xff]
    %v117 = vld [vmem:[#allocation2 + $0x58] sm:$0xff]
    %v118 = vld [vmem:[#allocation2 + $0x60] sm:$0xff]
    %v119 = vld [vmem:[#allocation2 + $0x68] sm:$0xff]
    %v120 = vld [vmem:[#allocation2 + $0x70] sm:$0xff]
    %v121 = vld [vmem:[#allocation2 + $0x78] sm:$0xff]
    %v122 = vld [vmem:[#allocation2 + $0x80] sm:$0xff]
    %v123 = vld [vmem:[#allocation2 + $0x88] sm:$0xff]
    %v124 = vld [vmem:[#allocation2 + $0x90] sm:$0xff]
    %v125 = vld [vmem:[#allocation2 + $0x98] sm:$0xff]
    %v126 = vld [vmem:[#allocation2 + $0xa0] sm:$0xff]
    %v127 = vld [vmem:[#allocation2 + $0xa8] sm:$0xff]
    %v128 = vld [vmem:[#allocation2 + $0xb0] sm:$0xff]
    %v129 = vld [vmem:[#allocation2 + $0xb8] sm:$0xff]
    %v130 = vld [vmem:[#allocation2 + $0xc0] sm:$0xff]
    %v131 = vld [vmem:[#allocation2 + $0xc8] sm:$0xff]
    %v132 = vld [vmem:[#allocation2 + $0xd0] sm:$0xff]
    %v133 = vld [vmem:[#allocation2 + $0xd8] sm:$0xff]
    %v134 = vld [vmem:[#allocation2 + $0xe0] sm:$0xff]
    %v135 = vld [vmem:[#allocation2 + $0xe8] sm:$0xff]
    %v136 = vld [vmem:[#allocation2 + $0xf0] sm:$0xff]
    %v137 = vld [vmem:[#allocation2 + $0xf8] sm:$0xff]
    %138 = vmatprep.subr.mxu0 0.0
    %139 = vmatpush1.msra.mxu0 %v106
    %140 = vmatprep.subr.mxu0 0.0
    %141 = vmatpush1.msra.mxu0 %v107
    %142 = vmatprep.subr.mxu0 0.0
    %143 = vmatpush1.msra.mxu0 %v108
    %144 = vmatprep.subr.mxu0 0.0
    %145 = vmatpush1.msra.mxu0 %v109
    %146 = vmatprep.subr.mxu0 0.0
    %147 = vmatpush1.msra.mxu0 %v110
    %148 = vmatprep.subr.mxu0 0.0
    %149 = vmatpush1.msra.mxu0 %v111
    %150 = vmatprep.subr.mxu0 0.0
    %151 = vmatpush1.msra.mxu0 %v112
    %152 = vmatprep.subr.mxu0 0.0
    %153 = vmatpush1.msra.mxu0 %v113
    %154 = vmatprep.subr.mxu0 0.0
    %155 = vmatpush1.msra.mxu0 %v114
    %156 = vmatprep.subr.mxu0 0.0
    %157 = vmatpush1.msra.mxu0 %v115
    %158 = vmatprep.subr.mxu0 0.0
    %159 = vmatpush1.msra.mxu0 %v116
    %160 = vmatprep.subr.mxu0 0.0
    %161 = vmatpush1.msra.mxu0 %v117
    %162 = vmatprep.subr.mxu0 0.0
    %163 = vmatpush1.msra.mxu0 %v118
    %164 = vmatprep.subr.mxu0 0.0
    %165 = vmatpush1.msra.mxu0 %v119
    %166 = vmatprep.subr.mxu0 0.0
    %167 = vmatpush1.msra.mxu0 %v120
    %168 = vmatprep.subr.mxu0 0.0
    %169 = vmatpush1.msra.mxu0 %v121
    %170 = vmatprep.subr.mxu0 0.0
    %171 = vmatpush1.msra.mxu0 %v122
    %172 = vmatprep.subr.mxu0 0.0
    %173 = vmatpush1.msra.mxu0 %v123
    %174 = vmatprep.subr.mxu0 0.0
    %175 = vmatpush1.msra.mxu0 %v124
    %176 = vmatprep.subr.mxu0 0.0
    %177 = vmatpush1.msra.mxu0 %v125
    %178 = vmatprep.subr.mxu0 0.0
    %179 = vmatpush1.msra.mxu0 %v126
    %180 = vmatprep.subr.mxu0 0.0
    %181 = vmatpush1.msra.mxu0 %v127
    %182 = vmatprep.subr.mxu0 0.0
    %183 = vmatpush1.msra.mxu0 %v128
    %184 = vmatprep.subr.mxu0 0.0
    %185 = vmatpush1.msra.mxu0 %v129
    %186 = vmatprep.subr.mxu0 0.0
    %187 = vmatpush1.msra.mxu0 %v130
    %188 = vmatprep.subr.mxu0 0.0
    %189 = vmatpush1.msra.mxu0 %v131
    %190 = vmatprep.subr.mxu0 0.0
    %191 = vmatpush1.msra.mxu0 %v132
    %192 = vmatprep.subr.mxu0 0.0
    %193 = vmatpush1.msra.mxu0 %v133
    %194 = vmatprep.subr.mxu0 0.0
    %195 = vmatpush1.msra.mxu0 %v134
    %196 = vmatprep.subr.mxu0 0.0
    %197 = vmatpush1.msra.mxu0 %v135
    %198 = vmatprep.subr.mxu0 0.0
    %199 = vmatpush1.msra.mxu0 %v136
    %200 = vmatprep.subr.mxu0 0.0
    %201 = vmatpush1.msra.mxu0 %v137
    %202 = vmatprep.mubr.f32.mxu0 %v104
    %203 = vmatmul.mubr.f32.gmra.mrb[0].mxu0 %v102
    %v204 = vpop.f32.mrb[0].mxu0
    %v205 = vadd.f32 0.0, %v204
    %v206 = vpop.f32.mrb[0].mxu0
    %207 = vdwg.mxu0
    %208 = vst [vmem:[%s3] sm:$0xff] %v205
    // Predicated region
    $region18: #{policy_forward.1} parent=1 // pred_check
      _
    $region19: #{policy_forward.1} parent=1 // pred_check_branch
      %210 = sbr.rel (0) target = $region21
    $region20: #{policy_forward.1} parent=1 // pred_region
      _
    $region21: #{policy_forward.1} parent=1 // pred_fallthru
      _
    // Predicated region
    $region22: #{policy_forward.1} parent=1 // pred_check
      _
    $region23: #{policy_forward.1} parent=1 // pred_check_branch
      %212 = sbr.rel (0) target = $region25
    $region24: #{policy_forward.1} parent=1 // pred_region
      _
    $region25: #{policy_forward.1} parent=1 // pred_fallthru
      _
    %213 = vsyncpa [#allocation3], 1

</llo_original>
